<compile_context>
chip_gen: v5e
topology: v5e:2x2
jax: 0.10.0
libtpu: 0.0.40
codegen_flags: <defaults>
</compile_context>

<pallas_src>
import functools

import jax
import jax.numpy as jnp
from jax.experimental import pallas as pl
from jax.experimental.pallas import tpu as pltpu


def _conv3x3_kernel(*refs, C_in, W, P, N, num_tiles, has_bias):
    if has_bias:
        x_ref, w_ref, col_ref, b_ref, o_ref, stk_ref = refs
    else:
        x_ref, w_ref, col_ref, o_ref, stk_ref = refs
        b_ref = None

    # x_ref:   (C_in, HW + 2P)   padded flat image, resident across spatial tiles
    # w_ref:   (C_out, 9*C_in)   column = ((dy+1)*3 + (dx+1))*C_in + c
    # col_ref: (1, N)            column index of each output lane in this tile
    # o_ref:   (C_out, N)
    # stk_ref: (9*C_in, N)       im2col scratch (sublane-stacked taps)

    if num_tiles == 1:
        base = 0                                   # fully static slicing
    else:
        base = pl.multiple_of(pl.program_id(1) * N, 128)

    col = col_ref[...]                             # (1, N) int32
    mask_l = col >= 1                              # valid source when dx == -1
    mask_r = col < (W - 1)                         # valid source when dx == +1
    zero = jnp.array(0, dtype=x_ref.dtype)

    k = 0
    for dy in (-1, 0, 1):
        for dx in (-1, 0, 1):
            start = base + P + dy * W + dx
            patch = x_ref[:, pl.ds(start, N)]      # (C_in, N)
            if dx == -1:
                patch = jnp.where(mask_l, patch, zero)
            elif dx == 1:
                patch = jnp.where(mask_r, patch, zero)
            stk_ref[k * C_in:(k + 1) * C_in, :] = patch
            k += 1

    # Single fused MXU contraction over all 9 taps (K = 9*C_in), f32 accumulate.
    acc = jnp.dot(w_ref[...], stk_ref[...], preferred_element_type=jnp.float32)
    if b_ref is not None:
        acc = acc + b_ref[...].astype(jnp.float32)
    o_ref[...] = acc.astype(o_ref.dtype)


def _pick_tile(hw, target):
    """Largest multiple-of-128 divisor of hw that is <= target (else whole image)."""
    if hw <= target:
        return hw
    n = (target // 128) * 128
    while n >= 128:
        if hw % n == 0:
            return n
        n -= 128
    return hw


@functools.partial(jax.jit, static_argnames=("tile_lanes",))
def overlap_patch_embed(x, weight, bias=None, *, tile_lanes=4096):
    """x: (B, C_in, H, W); weight: (C_out, C_in, 3, 3); bias: (C_out,) or None."""
    B, C_in, H, W = x.shape
    C_out = weight.shape[0]
    HW = H * W
    P = W + 1                                       # flat-axis halo (covers dy*W + dx)
    N = _pick_tile(HW, tile_lanes)
    num_tiles = HW // N

    # Free reshape (stays channels-on-sublanes, H*W on lanes) + tiny flat pad
    # that implements the conv's zero padding for dy = +-1.
    x_pad = jnp.pad(x.reshape(B, C_in, HW), ((0, 0), (0, 0), (P, P)))
    HWp = HW + 2 * P

    # (C_out, C_in, 3, 3) -> (C_out, 3, 3, C_in) -> (C_out, 9*C_in); the column
    # ordering matches the tap-major sublane stacking built in the kernel.
    w_flat = jnp.transpose(weight, (0, 2, 3, 1)).reshape(C_out, 9 * C_in).astype(x.dtype)

    col_idx = (jnp.arange(HW, dtype=jnp.int32) % W).reshape(1, HW)

    in_specs = [
        pl.BlockSpec((None, C_in, HWp), lambda b, t: (b, 0, 0)),   # resident per image
        pl.BlockSpec((C_out, 9 * C_in), lambda b, t: (0, 0)),
        pl.BlockSpec((1, N), lambda b, t: (0, t)),
    ]
    args = [x_pad, w_flat, col_idx]
    has_bias = bias is not None
    if has_bias:
        in_specs.append(pl.BlockSpec((C_out, 1), lambda b, t: (0, 0)))
        args.append(bias.reshape(C_out, 1).astype(jnp.float32))

    kernel = functools.partial(
        _conv3x3_kernel, C_in=C_in, W=W, P=P, N=N,
        num_tiles=num_tiles, has_bias=has_bias)

    itemsize = jnp.dtype(x.dtype).itemsize
    cost = pl.CostEstimate(
        flops=2 * 9 * C_in * C_out * HW * B,
        transcendentals=0,
        bytes_accessed=(C_in + C_out) * HW * itemsize * B,
    )

    out = pl.pallas_call(
        kernel,
        out_shape=jax.ShapeDtypeStruct((B, C_out, HW), x.dtype),
        grid_spec=pltpu.PrefetchScalarGridSpec(
            num_scalar_prefetch=0,
            grid=(B, num_tiles),
            in_specs=in_specs,
            out_specs=pl.BlockSpec((None, C_out, N), lambda b, t: (b, 0, t)),
            scratch_shapes=[pltpu.VMEM((9 * C_in, N), x.dtype)],
        ),
        compiler_params=pltpu.CompilerParams(
            dimension_semantics=("parallel", "parallel"),
            vmem_limit_bytes=32 * 1024 * 1024,
        ),
        cost_estimate=cost,
    )(*args)

    return out.reshape(B, C_out, H, W)


if __name__ == "__main__":
    key = jax.random.PRNGKey(0)
    kx, kw = jax.random.split(key, 2)

    # Module defaults: in_c=3, embed_dim=48, bias=False.
    B, C_in, H, W = 2, 3, 16, 16
    C_out = 48
    x = jax.random.normal(kx, (B, C_in, H, W), dtype=jnp.float32)
    fan_in = C_in * 3 * 3
    weight = (jax.random.normal(kw, (C_out, C_in, 3, 3), dtype=jnp.float32)
              / jnp.sqrt(fan_in))

    y = overlap_patch_embed(x, weight)              # bias=False path
    y = jax.block_until_ready(y)

    # Pure-JAX/XLA reference: same cross-correlation conv, stride 1, pad 1.
    ref = jax.lax.conv_general_dilated(
        x, weight, window_strides=(1, 1), padding=((1, 1), (1, 1)),
        dimension_numbers=("NCHW", "OIHW", "NCHW"))

    assert y.shape == (B, C_out, H, W)
    err = float(jnp.max(jnp.abs(y - ref)))
    assert err < 1e-4, f"max abs err {err}"
    print("KERNEL_OK")
</pallas_src>

<mosaic_0001>
module attributes {stable_mosaic.version = 11 : i64} {
  func.func @_conv3x3_kernel(%arg0: i32, %arg1: i32, %arg2: memref<1x3x290xf32, #tpu.memory_space<vmem>>, %arg3: memref<48x27xf32, #tpu.memory_space<vmem>>, %arg4: memref<1x256xi32, #tpu.memory_space<vmem>>, %arg5: memref<1x48x256xf32, #tpu.memory_space<vmem>>, %arg6: memref<27x256xf32, #tpu.memory_space<vmem>>) attributes {dimension_semantics = [#tpu.dimension_semantics<parallel>, #tpu.dimension_semantics<parallel>], iteration_bounds = array<i64: 2, 1>, scalar_prefetch = 0 : i64, scratch_operands = 1 : i64, tpu.core_type = #tpu.core_type<tc>, window_params = [{transform_indices = @transform_0, window_bounds = array<i64: 1, 3, 290>}, {pipeline_mode = #tpu.pipeline_mode<synchronous>, transform_indices = @transform_1, window_bounds = array<i64: 48, 27>}, {transform_indices = @transform_2, window_bounds = array<i64: 1, 256>}, {transform_indices = @transform_3, window_bounds = array<i64: 1, 48, 256>}]} {
    %c0 = arith.constant 0 : index
    %c0_0 = arith.constant 0 : index
    %0 = vector.load %arg4[%c0, %c0_0] : memref<1x256xi32, #tpu.memory_space<vmem>>, vector<1x256xi32>
    %c1_i32 = arith.constant 1 : i32
    %1 = vector.broadcast %c1_i32 : i32 to vector<1x256xi32>
    %2 = arith.cmpi sge, %0, %1 : vector<1x256xi32>
    %c15_i32 = arith.constant 15 : i32
    %3 = vector.broadcast %c15_i32 : i32 to vector<1x256xi32>
    %4 = arith.cmpi slt, %0, %3 : vector<1x256xi32>
    %c0_1 = arith.constant 0 : index
    %c0_2 = arith.constant 0 : index
    %c0_3 = arith.constant 0 : index
    %5 = vector.load %arg2[%c0_1, %c0_2, %c0_3] : memref<1x3x290xf32, #tpu.memory_space<vmem>>, vector<1x3x256xf32>
    %6 = vector.shape_cast %5 : vector<1x3x256xf32> to vector<3x256xf32>
    %cst = arith.constant 0.000000e+00 : f32
    %7 = vector.shape_cast %2 : vector<1x256xi1> to vector<1x256xi1>
    %8 = vector.broadcast %7 : vector<1x256xi1> to vector<3x256xi1>
    %9 = vector.broadcast %cst : f32 to vector<3x256xf32>
    %10 = arith.select %8, %6, %9 : vector<3x256xi1>, vector<3x256xf32>
    %c0_4 = arith.constant 0 : index
    %c0_5 = arith.constant 0 : index
    %11 = vector.load %arg6[%c0_4, %c0_5] : memref<27x256xf32, #tpu.memory_space<vmem>>, vector<3x256xf32>
    tpu.vector_store %arg6[%c0_4, %c0_5], %10 {strides = array<i32>} : memref<27x256xf32, #tpu.memory_space<vmem>>, vector<3x256xf32>,
    %c0_6 = arith.constant 0 : index
    %c0_7 = arith.constant 0 : index
    %c1 = arith.constant 1 : index
    %12 = vector.load %arg2[%c0_6, %c0_7, %c1] : memref<1x3x290xf32, #tpu.memory_space<vmem>>, vector<1x3x256xf32>
    %13 = vector.shape_cast %12 : vector<1x3x256xf32> to vector<3x256xf32>
    %c3 = arith.constant 3 : index
    %c0_8 = arith.constant 0 : index
    %14 = vector.load %arg6[%c3, %c0_8] : memref<27x256xf32, #tpu.memory_space<vmem>>, vector<3x256xf32>
    tpu.vector_store %arg6[%c3, %c0_8], %13 {strides = array<i32>} : memref<27x256xf32, #tpu.memory_space<vmem>>, vector<3x256xf32>,
    %c0_9 = arith.constant 0 : index
    %c0_10 = arith.constant 0 : index
    %c2 = arith.constant 2 : index
    %15 = vector.load %arg2[%c0_9, %c0_10, %c2] : memref<1x3x290xf32, #tpu.memory_space<vmem>>, vector<1x3x256xf32>
    %16 = vector.shape_cast %15 : vector<1x3x256xf32> to vector<3x256xf32>
    %cst_11 = arith.constant 0.000000e+00 : f32
    %17 = vector.shape_cast %4 : vector<1x256xi1> to vector<1x256xi1>
    %18 = vector.broadcast %17 : vector<1x256xi1> to vector<3x256xi1>
    %19 = vector.broadcast %cst_11 : f32 to vector<3x256xf32>
    %20 = arith.select %18, %16, %19 : vector<3x256xi1>, vector<3x256xf32>
    %c6 = arith.constant 6 : index
    %c0_12 = arith.constant 0 : index
    %21 = vector.load %arg6[%c6, %c0_12] : memref<27x256xf32, #tpu.memory_space<vmem>>, vector<3x256xf32>
    tpu.vector_store %arg6[%c6, %c0_12], %20 {strides = array<i32>} : memref<27x256xf32, #tpu.memory_space<vmem>>, vector<3x256xf32>,
    %c0_13 = arith.constant 0 : index
    %c0_14 = arith.constant 0 : index
    %c16 = arith.constant 16 : index
    %22 = vector.load %arg2[%c0_13, %c0_14, %c16] : memref<1x3x290xf32, #tpu.memory_space<vmem>>, vector<1x3x256xf32>
    %23 = vector.shape_cast %22 : vector<1x3x256xf32> to vector<3x256xf32>
    %cst_15 = arith.constant 0.000000e+00 : f32
    %24 = vector.shape_cast %2 : vector<1x256xi1> to vector<1x256xi1>
    %25 = vector.broadcast %24 : vector<1x256xi1> to vector<3x256xi1>
    %26 = vector.broadcast %cst_15 : f32 to vector<3x256xf32>
    %27 = arith.select %25, %23, %26 : vector<3x256xi1>, vector<3x256xf32>
    %c9 = arith.constant 9 : index
    %c0_16 = arith.constant 0 : index
    %28 = vector.load %arg6[%c9, %c0_16] : memref<27x256xf32, #tpu.memory_space<vmem>>, vector<3x256xf32>
    tpu.vector_store %arg6[%c9, %c0_16], %27 {strides = array<i32>} : memref<27x256xf32, #tpu.memory_space<vmem>>, vector<3x256xf32>,
    %c0_17 = arith.constant 0 : index
    %c0_18 = arith.constant 0 : index
    %c17 = arith.constant 17 : index
    %29 = vector.load %arg2[%c0_17, %c0_18, %c17] : memref<1x3x290xf32, #tpu.memory_space<vmem>>, vector<1x3x256xf32>
    %30 = vector.shape_cast %29 : vector<1x3x256xf32> to vector<3x256xf32>
    %c12 = arith.constant 12 : index
    %c0_19 = arith.constant 0 : index
    %31 = vector.load %arg6[%c12, %c0_19] : memref<27x256xf32, #tpu.memory_space<vmem>>, vector<3x256xf32>
    tpu.vector_store %arg6[%c12, %c0_19], %30 {strides = array<i32>} : memref<27x256xf32, #tpu.memory_space<vmem>>, vector<3x256xf32>,
    %c0_20 = arith.constant 0 : index
    %c0_21 = arith.constant 0 : index
    %c18 = arith.constant 18 : index
    %32 = vector.load %arg2[%c0_20, %c0_21, %c18] : memref<1x3x290xf32, #tpu.memory_space<vmem>>, vector<1x3x256xf32>
    %33 = vector.shape_cast %32 : vector<1x3x256xf32> to vector<3x256xf32>
    %cst_22 = arith.constant 0.000000e+00 : f32
    %34 = vector.shape_cast %4 : vector<1x256xi1> to vector<1x256xi1>
    %35 = vector.broadcast %34 : vector<1x256xi1> to vector<3x256xi1>
    %36 = vector.broadcast %cst_22 : f32 to vector<3x256xf32>
    %37 = arith.select %35, %33, %36 : vector<3x256xi1>, vector<3x256xf32>
    %c15 = arith.constant 15 : index
    %c0_23 = arith.constant 0 : index
    %38 = vector.load %arg6[%c15, %c0_23] : memref<27x256xf32, #tpu.memory_space<vmem>>, vector<3x256xf32>
    tpu.vector_store %arg6[%c15, %c0_23], %37 {strides = array<i32>} : memref<27x256xf32, #tpu.memory_space<vmem>>, vector<3x256xf32>,
    %c0_24 = arith.constant 0 : index
    %c0_25 = arith.constant 0 : index
    %c32 = arith.constant 32 : index
    %39 = vector.load %arg2[%c0_24, %c0_25, %c32] : memref<1x3x290xf32, #tpu.memory_space<vmem>>, vector<1x3x256xf32>
    %40 = vector.shape_cast %39 : vector<1x3x256xf32> to vector<3x256xf32>
    %cst_26 = arith.constant 0.000000e+00 : f32
    %41 = vector.shape_cast %2 : vector<1x256xi1> to vector<1x256xi1>
    %42 = vector.broadcast %41 : vector<1x256xi1> to vector<3x256xi1>
    %43 = vector.broadcast %cst_26 : f32 to vector<3x256xf32>
    %44 = arith.select %42, %40, %43 : vector<3x256xi1>, vector<3x256xf32>
    %c18_27 = arith.constant 18 : index
    %c0_28 = arith.constant 0 : index
    %45 = vector.load %arg6[%c18_27, %c0_28] : memref<27x256xf32, #tpu.memory_space<vmem>>, vector<3x256xf32>
    tpu.vector_store %arg6[%c18_27, %c0_28], %44 {strides = array<i32>} : memref<27x256xf32, #tpu.memory_space<vmem>>, vector<3x256xf32>,
    %c0_29 = arith.constant 0 : index
    %c0_30 = arith.constant 0 : index
    %c33 = arith.constant 33 : index
    %46 = vector.load %arg2[%c0_29, %c0_30, %c33] : memref<1x3x290xf32, #tpu.memory_space<vmem>>, vector<1x3x256xf32>
    %47 = vector.shape_cast %46 : vector<1x3x256xf32> to vector<3x256xf32>
    %c21 = arith.constant 21 : index
    %c0_31 = arith.constant 0 : index
    %48 = vector.load %arg6[%c21, %c0_31] : memref<27x256xf32, #tpu.memory_space<vmem>>, vector<3x256xf32>
    tpu.vector_store %arg6[%c21, %c0_31], %47 {strides = array<i32>} : memref<27x256xf32, #tpu.memory_space<vmem>>, vector<3x256xf32>,
    %c0_32 = arith.constant 0 : index
    %c0_33 = arith.constant 0 : index
    %c34 = arith.constant 34 : index
    %49 = vector.load %arg2[%c0_32, %c0_33, %c34] : memref<1x3x290xf32, #tpu.memory_space<vmem>>, vector<1x3x256xf32>
    %50 = vector.shape_cast %49 : vector<1x3x256xf32> to vector<3x256xf32>
    %cst_34 = arith.constant 0.000000e+00 : f32
    %51 = vector.shape_cast %4 : vector<1x256xi1> to vector<1x256xi1>
    %52 = vector.broadcast %51 : vector<1x256xi1> to vector<3x256xi1>
    %53 = vector.broadcast %cst_34 : f32 to vector<3x256xf32>
    %54 = arith.select %52, %50, %53 : vector<3x256xi1>, vector<3x256xf32>
    %c24 = arith.constant 24 : index
    %c0_35 = arith.constant 0 : index
    %55 = vector.load %arg6[%c24, %c0_35] : memref<27x256xf32, #tpu.memory_space<vmem>>, vector<3x256xf32>
    tpu.vector_store %arg6[%c24, %c0_35], %54 {strides = array<i32>} : memref<27x256xf32, #tpu.memory_space<vmem>>, vector<3x256xf32>,
    %c0_36 = arith.constant 0 : index
    %c0_37 = arith.constant 0 : index
    %56 = vector.load %arg3[%c0_36, %c0_37] : memref<48x27xf32, #tpu.memory_space<vmem>>, vector<48x27xf32>
    %c0_38 = arith.constant 0 : index
    %c0_39 = arith.constant 0 : index
    %57 = vector.load %arg6[%c0_38, %c0_39] : memref<27x256xf32, #tpu.memory_space<vmem>>, vector<27x256xf32>
    %cst_40 = arith.constant dense<0.000000e+00> : vector<48x256xf32>
    %58 = tpu.matmul %56, %57, %cst_40 {dimension_numbers = #tpu.dot_dimension_numbers<[1], [0], [0], [1], [0, 0, 1, 1], [], []>} : vector<48x27xf32>, vector<27x256xf32>, vector<48x256xf32> -> vector<48x256xf32>
    %c0_41 = arith.constant 0 : index
    %c0_42 = arith.constant 0 : index
    %c0_43 = arith.constant 0 : index
    %59 = vector.load %arg5[%c0_41, %c0_42, %c0_43] : memref<1x48x256xf32, #tpu.memory_space<vmem>>, vector<1x48x256xf32>
    %60 = vector.shape_cast %59 : vector<1x48x256xf32> to vector<48x256xf32>
    %61 = vector.shape_cast %58 : vector<48x256xf32> to vector<1x48x256xf32>
    tpu.vector_store %arg5[%c0_41, %c0_42, %c0_43], %61 {strides = array<i32>} : memref<1x48x256xf32, #tpu.memory_space<vmem>>, vector<1x48x256xf32>,
    return
  }
  func.func @transform_0(%arg0: i32, %arg1: i32) -> (i32, i32, i32) {
    %c0_i32 = arith.constant 0 : i32
    %c0_i32_0 = arith.constant 0 : i32
    %c0_i32_1 = arith.constant 0 : i32
    return %arg0, %c0_i32, %c0_i32_0 : i32, i32, i32
  }
  func.func @transform_1(%arg0: i32, %arg1: i32) -> (i32, i32) {
    %c0_i32 = arith.constant 0 : i32
    %c0_i32_0 = arith.constant 0 : i32
    %c0_i32_1 = arith.constant 0 : i32
    return %c0_i32, %c0_i32_0 : i32, i32
  }
  func.func @transform_2(%arg0: i32, %arg1: i32) -> (i32, i32) {
    %c0_i32 = arith.constant 0 : i32
    %c0_i32_0 = arith.constant 0 : i32
    return %c0_i32, %arg1 : i32, i32
  }
  func.func @transform_3(%arg0: i32, %arg1: i32) -> (i32, i32, i32) {
    %c0_i32 = arith.constant 0 : i32
    %c0_i32_0 = arith.constant 0 : i32
    return %arg0, %c0_i32, %arg1 : i32, i32, i32
  }
}

</mosaic_0001>

<llo_original>
// kernel: overlap_patch_embed.1
$region0: #{overlap_patch_embed.1}
  #allocation0 [shape = 'u32[]', space=smem, size = 0x4, offset = 0x4, fixed_abs, tag = 'smem constant byte address 0x4 - core index']
  #allocation1 [shape = 'u32[72,128]{1,0:T(1,128)}', space=vmem, size = 0x9000, scoped, tag = 'internal scratch']
  #allocation2 [shape = 'f32[27,256]{1,0:T(8,128)}', space=vmem, size = 0x8000, scoped, tag = 'scratch operand']
  %s0 = inlined_call_operand.vmem [shape: f32[2,3,290], index: 0, kind: input, shape index: {}]
  %s1 = inlined_call_operand.vmem [shape: f32[48,27], index: 1, kind: input, shape index: {}]
  %s2 = inlined_call_operand.vmem [shape: s32[1,256], index: 2, kind: input, shape index: {}]
  %s3 = inlined_call_operand.vmem [shape: f32[2,48,256], index: 3, kind: output, shape index: {}]
  %s4 = sld [smem:[#allocation0]]
  $region45: #{overlap_patch_embed.1} parent=0
    _
  %s6 = ssub.s32 1, %s4
  %s7 = scalar_select 0, %s6, %s4
  loop: start=0, step=1, limit=4
  $region2: #{overlap_patch_embed.1} parent=0 // loop_pre_header
    _
  $region3: #{overlap_patch_embed.1} parent=0 // loop_header
    %s9 = sphi 0, %s13
    %p10 = scmp.ge.s32.totalorder %s9, 4
    %s16 = sphi 0, %s28
    %s17 = sphi 0, %s24
    %s18 = sphi 0, %s16
    %s19 = sphi 0, %s17
    %s20 = sphi 0, %s18
    %s21 = sphi 0, %s19
    %s31 = sphi 0, %s33
    %s34 = sphi 0, %s31
    %s35 = sphi 0, %s34
    %s51 = sphi 0, %s35
    %s55 = sphi 0, %s55
    %s57 = sphi 0, %s55
    %s58 = sphi 0, %s57
    %s72 = sphi 0, %s58
    %s78 = sphi 0, %s80
    %s81 = sphi 0, %s78
    %s82 = sphi 0, %s81
    %s98 = sphi 0, %s82
    %s106 = sphi 0, %s108
    %s109 = sphi 0, %s106
    %s110 = sphi 0, %s109
    %s126 = sphi 0, %s110
  $region4: #{overlap_patch_embed.1} parent=0 // loop_header_branch
    %12 = sbr.rel (%p10) target = $region8
  $region5: #{overlap_patch_embed.1} parent=0 // loop_body
    %s14 = ssub.s32 %s9, 1
    %s15 = ssub.s32 %s9, 2
    %s22 = sadd.s32 1, %s17
    %p23 = scmp.ge.s32.totalorder %s22, 1
    %s24 = scalar_select %p23, 0, %s22
    %s25 = sadd.s32 1, %s16
    %s26 = scalar_select %p23, %s25, %s16
    %p27 = scmp.ge.s32.totalorder %s26, 2
    %s28 = scalar_select %p27, 0, %s26
    %s29 = ssub.s32 %s16, %s28
    %p30 = scmp.eq.s32.totalorder %s29, 0
    %s32 = sadd.s32 %s31, 1
    %s33 = scalar_select %p30, %s31, %s32
    %p36 = pneg %p30
    %p37 = scmp.eq.s32.totalorder %s9, 1
    %p38 = por %p36, %p37
    %p39 = scmp.ne.s32.totalorder %s31, %s34
    %p40 = scmp.eq.s32.totalorder %s9, 0
    %p41 = por %p39, %p40
    %p42 = scmp.ne.s32.totalorder %s31, %s34
    %p43 = scmp.eq.s32.totalorder %s14, 1
    %p44 = por %p42, %p43
    %p45 = scmp.ne.s32.totalorder %s34, %s35
    %p46 = scmp.eq.s32.totalorder %s14, 0
    %p47 = por %p45, %p46
    %p48 = scmp.ne.s32.totalorder %s34, %s35
    %p49 = scmp.eq.s32.totalorder %s15, 1
    %p50 = por %p48, %p49
    %p52 = scmp.ne.s32.totalorder %s35, %s51
    %p53 = scmp.eq.s32.totalorder %s15, 0
    %p54 = por %p52, %p53
    %s56 = sadd.s32 %s55, 1
    %p59 = scmp.eq.s32.totalorder %s9, 1
    %p60 = scmp.ne.s32.totalorder %s55, %s57
    %p61 = scmp.eq.s32.totalorder %s9, 0
    %p62 = por %p60, %p61
    %p63 = scmp.ne.s32.totalorder %s55, %s57
    %p64 = scmp.eq.s32.totalorder %s14, 1
    %p65 = por %p63, %p64
    %p66 = scmp.ne.s32.totalorder %s57, %s58
    %p67 = scmp.eq.s32.totalorder %s14, 0
    %p68 = por %p66, %p67
    %p69 = scmp.ne.s32.totalorder %s57, %s58
    %p70 = scmp.eq.s32.totalorder %s15, 1
    %p71 = por %p69, %p70
    %p73 = scmp.ne.s32.totalorder %s58, %s72
    %p74 = scmp.eq.s32.totalorder %s15, 0
    %p75 = por %p73, %p74
    %s76 = ssub.s32 %s17, %s24
    %p77 = scmp.eq.s32.totalorder %s76, 0
    %s79 = sadd.s32 %s78, 1
    %s80 = scalar_select %p77, %s78, %s79
    %p83 = pneg %p77
    %p84 = scmp.eq.s32.totalorder %s9, 1
    %p85 = por %p83, %p84
    %p86 = scmp.ne.s32.totalorder %s78, %s81
    %p87 = scmp.eq.s32.totalorder %s9, 0
    %p88 = por %p86, %p87
    %p89 = scmp.ne.s32.totalorder %s78, %s81
    %p90 = scmp.eq.s32.totalorder %s14, 1
    %p91 = por %p89, %p90
    %p92 = scmp.ne.s32.totalorder %s81, %s82
    %p93 = scmp.eq.s32.totalorder %s14, 0
    %p94 = por %p92, %p93
    %p95 = scmp.ne.s32.totalorder %s81, %s82
    %p96 = scmp.eq.s32.totalorder %s15, 1
    %p97 = por %p95, %p96
    %p99 = scmp.ne.s32.totalorder %s82, %s98
    %p100 = scmp.eq.s32.totalorder %s15, 0
    %p101 = por %p99, %p100
    %s102 = ssub.s32 %s16, %s28
    %s103 = ssub.s32 %s17, %s24
    %s104 = sor.u32 %s102, %s103
    %p105 = scmp.eq.s32.totalorder %s104, 0
    %s107 = sadd.s32 %s106, 1
    %s108 = scalar_select %p105, %s106, %s107
    %p111 = pneg %p105
    %p112 = scmp.eq.s32.totalorder %s9, 1
    %p113 = por %p111, %p112
    %p114 = scmp.ne.s32.totalorder %s106, %s109
    %p115 = scmp.eq.s32.totalorder %s9, 0
    %p116 = por %p114, %p115
    %p117 = scmp.ne.s32.totalorder %s106, %s109
    %p118 = scmp.eq.s32.totalorder %s14, 1
    %p119 = por %p117, %p118
    %p120 = scmp.ne.s32.totalorder %s109, %s110
    %p121 = scmp.eq.s32.totalorder %s14, 0
    %p122 = por %p120, %p121
    %p123 = scmp.ne.s32.totalorder %s109, %s110
    %p124 = scmp.eq.s32.totalorder %s15, 1
    %p125 = por %p123, %p124
    %p127 = scmp.ne.s32.totalorder %s110, %s126
    %p128 = scmp.eq.s32.totalorder %s15, 0
    %p129 = por %p127, %p128
    %p130 = scmp.le.s32.totalorder 1, %s9
    %p131 = scmp.lt.s32.totalorder %s9, 3
    %p132 = pnand %p130, %p131
    %p133 = pneg %p132
    // Predicated region
    $region9: #{overlap_patch_embed.1} parent=5 // pred_check
      _
    $region10: #{overlap_patch_embed.1} parent=5 // pred_check_branch
      %135 = sbr.rel (%p132) target = $region12
    $region11: #{overlap_patch_embed.1} parent=5 // pred_region
      %s136 = ssub.s32 %s9, 1
      // Predicated region
      $region13: #{overlap_patch_embed.1} parent=11 // pred_check
        %p137 = pneg %p68
      $region14: #{overlap_patch_embed.1} parent=11 // pred_check_branch
        %139 = sbr.rel (%p137) target = $region16
      $region15: #{overlap_patch_embed.1} parent=11 // pred_region
        _
      $region16: #{overlap_patch_embed.1} parent=11 // pred_fallthru
        _
      // Predicated region
      $region17: #{overlap_patch_embed.1} parent=11 // pred_check
        %p140 = pneg %p94
      $region18: #{overlap_patch_embed.1} parent=11 // pred_check_branch
        %142 = sbr.rel (%p140) target = $region20
      $region19: #{overlap_patch_embed.1} parent=11 // pred_region
        %s143 = smul.u32 2, %s19
        %p144 = scmp.lt.s32.totalorder %s143, 1
        %s145 = scalar_select %p144, %s143, 1
        %s146 = scalar_lea.vmem %s2, %s145
        %s147 = smul.u32 2, %s19
      $region20: #{overlap_patch_embed.1} parent=11 // pred_fallthru
        _
    $region12: #{overlap_patch_embed.1} parent=5 // pred_fallthru
      _
    %p148 = scmp.lt.s32.totalorder %s9, 2
    // Predicated region
    $region21: #{overlap_patch_embed.1} parent=5 // pred_check
      %p149 = pneg %p148
    $region22: #{overlap_patch_embed.1} parent=5 // pred_check_branch
      %151 = sbr.rel (%p149) target = $region24
    $region23: #{overlap_patch_embed.1} parent=5 // pred_region
      // Predicated region
      $region25: #{overlap_patch_embed.1} parent=23 // pred_check
        %p152 = pneg %p41
      $region26: #{overlap_patch_embed.1} parent=23 // pred_check_branch
        %154 = sbr.rel (%p152) target = $region28
      $region27: #{overlap_patch_embed.1} parent=23 // pred_region
        %p155 = scmp.lt.s32.totalorder %s16, 1
        %s156 = scalar_select %p155, %s16, 1
        %s157 = smul.addr %s156, 3
        %s158 = smul.addr %s157, 4
        %s159 = scalar_lea.vmem %s0, %s158
      $region28: #{overlap_patch_embed.1} parent=23 // pred_fallthru
        _
    $region24: #{overlap_patch_embed.1} parent=5 // pred_fallthru
      _
    %p160 = scmp.le.s32.totalorder 1, %s9
    %p161 = scmp.lt.s32.totalorder %s9, 3
    %p162 = pnand %p160, %p161
    %p163 = pneg %p162
    // Predicated region
    $region29: #{overlap_patch_embed.1} parent=5 // pred_check
      _
    $region30: #{overlap_patch_embed.1} parent=5 // pred_check_branch
      %165 = sbr.rel (%p162) target = $region32
    $region31: #{overlap_patch_embed.1} parent=5 // pred_region
      %s166 = ssub.s32 %s9, 1
      %p167 = scmp.lt.s32.totalorder %s18, 1
      %s168 = scalar_select %p167, %s18, 1
      %s169 = smul.addr %s168, 3
      %s170 = smul.addr %s169, 4
      %s171 = scalar_lea.vmem %s0, %s170
      %p172 = pneg %p47
      %p173 = pneg %p44
      %p174 = pneg %p68
      %p175 = pneg %p65
      %s176 = smul.u32 2, %s19
      %p177 = scmp.lt.s32.totalorder %s176, 1
      %s178 = scalar_select %p177, %s176, 1
      %s179 = scalar_lea.vmem %s2, %s178
      %p180 = pneg %p94
      %p181 = pneg %p91
      %p182 = pneg %p122
      %p183 = pneg %p119
      %s184 = smul.u32 2, %s19
      %p185 = scmp.lt.s32.totalorder %s18, 1
      %s186 = scalar_select %p185, %s18, 1
      %p187 = scmp.lt.s32.totalorder %s184, 1
      %s188 = scalar_select %p187, %s184, 1
      %s189 = smul.addr %s186, 12
      %s190 = sadd.s32 %s188, %s189
      %s191 = smul.addr %s190, 8
      %s192 = scalar_lea.vmem %s3, %s191
      %p193 = scmp.lt.s32.totalorder %s18, 1
      %s194 = scalar_select %p193, %s18, 1
      %s195 = smul.addr %s194, 3
      %s196 = smul.addr %s195, 4
      %s197 = scalar_lea.vmem %s0, %s196
      %s198 = smul.u32 2, %s19
      %p199 = scmp.lt.s32.totalorder %s198, 1
      %s200 = scalar_select %p199, %s198, 1
      %s201 = scalar_lea.vmem %s2, %s200
      %s202 = smul.u32 2, %s19
      %s203 = smul.u32 2, %s19
      %p204 = scmp.lt.s32.totalorder %s18, 1
      %s205 = scalar_select %p204, %s18, 1
      %p206 = scmp.lt.s32.totalorder %s203, 1
      %s207 = scalar_select %p206, %s203, 1
      %s208 = smul.addr %s205, 12
      %s209 = sadd.s32 %s207, %s208
      %s210 = smul.addr %s209, 8
      %s211 = scalar_lea.vmem %s3, %s210
      %s212 = smul.u32 2, %s19
      %v213 = vld [vmem:[%s201] sm:$0x3]
      %vm214 = vcmp.ge.s32.totalorder %v213, 1
      %vm215 = vcmp.lt.s32.totalorder %v213, 15
      %v216 = vld [vmem:[%s197] sm:$0x77]
      %v217 = vsel %vm214, 1, 0
      %v218 = vperm.slane %v217, 0
      %v219 = vperm.slane %v217, 1
      %vm220 = vcmp.eq.s32.totalorder %v218, 1
      %vm221 = vcmp.eq.s32.totalorder %v219, 1
      %223 = vst [vmem:[#allocation1] ss:$2 sm:$0xff] %v216
      %v224 = vld.sshfl [vmem:[#allocation1] sm:$0xff pattern:$0x75316420]
      %v225 = vld.sshfl [vmem:[#allocation1 + $0x8] sm:$0xff pattern:$0x75316420]
      %v228 = vsel %vm220, %v224, 0.0
      %v229 = vsel %vm221, %v225, 0.0
      %230 = vst [vmem:[#allocation2] sm:$0x7] %v228
      %231 = vst [vmem:[#allocation2 + $0x8] sm:$0x7] %v229
      %v232 = vld [vmem:[%s197] sm:$0x77]
      %v233 = vld [vmem:[%s197 + $0x8] sm:$0x7]
      %236 = vst [vmem:[#allocation1] ss:$2 sm:$0xff] %v232
      %s237 = scalar_lea.vmem [#allocation1], 16
      %238 = vst [vmem:[%s237] ss:$2 sm:$0xff] %v233
      %v239 = vld.sshfl [vmem:[#allocation1] sm:$0xff pattern:$0x75316420]
      %v240 = vld.sshfl [vmem:[#allocation1 + $0x8] sm:$0xff pattern:$0x75316420]
      %v241 = vld.sshfl [vmem:[#allocation1 + $0x10] sm:$0xff pattern:$0x75316420]
      %v242 = vrot.slane %v239, 5
      %v243 = vrot.slane %v240, 5
      %v244 = vrot.slane %v241, 5
      %245 = vrot.lane.b32.xlu0 %v242, 127
      %v246 = vpop.permute.xlu0 %245
      %247 = vrot.lane.b32.xlu0 %v243, 127
      %v248 = vpop.permute.xlu0 %247
      %249 = vrot.lane.b32.xlu0 %v244, 127
      %v250 = vpop.permute.xlu0 %249
      %vm251 = vcmask 1039360
      %v252 = vsel %vm251, %v246, %v248
      %v253 = vsel %vm251, %v248, %v250
      %256 = vst [vmem:[#allocation2] sm:$0x38] %v252
      %257 = vst [vmem:[#allocation2 + $0x8] sm:$0x38] %v253
      %v258 = vld [vmem:[%s197] sm:$0x77]
      %v259 = vld [vmem:[%s197 + $0x8] sm:$0x7]
      %v260 = vsel %vm215, 1, 0
      %v261 = vperm.slane %v260, 0
      %v262 = vperm.slane %v260, 1
      %vm263 = vcmp.eq.s32.totalorder %v261, 1
      %vm264 = vcmp.eq.s32.totalorder %v262, 1
      %267 = vst [vmem:[#allocation1] ss:$2 sm:$0xff] %v258
      %s268 = scalar_lea.vmem [#allocation1], 16
      %269 = vst [vmem:[%s268] ss:$2 sm:$0xff] %v259
      %v270 = vld.sshfl [vmem:[#allocation1] sm:$0xff pattern:$0x75316420]
      %v271 = vld.sshfl [vmem:[#allocation1 + $0x8] sm:$0xff pattern:$0x75316420]
      %v272 = vld.sshfl [vmem:[#allocation1 + $0x10] sm:$0xff pattern:$0x75316420]
      %273 = vrot.lane.b32.xlu0 %v270, 126
      %v274 = vpop.permute.xlu0 %273
      %275 = vrot.lane.b32.xlu0 %v271, 126
      %v276 = vpop.permute.xlu0 %275
      %277 = vrot.lane.b32.xlu0 %v272, 126
      %v278 = vpop.permute.xlu0 %277
      %vm279 = vcmask 1031168
      %v280 = vsel %vm279, %v274, %v276
      %v281 = vsel %vm279, %v276, %v278
      %v284 = vsel %vm263, %v280, 0.0
      %v285 = vsel %vm264, %v281, 0.0
      %v288 = vrot.slane %v284, 2
      %v289 = vrot.slane %v285, 2
      %292 = vst [vmem:[#allocation2] sm:$0xc0] %v288
      %293 = vst [vmem:[#allocation2 + $0x8] sm:$0xc0] %v289
      %294 = vst [vmem:[#allocation2 + $0x10] sm:$0x1] %v288
      %295 = vst [vmem:[#allocation2 + $0x18] sm:$0x1] %v289
      %v296 = vld [vmem:[%s197] sm:$0x77]
      %v297 = vld [vmem:[%s197 + $0x8] sm:$0x7]
      %300 = vst [vmem:[#allocation1] ss:$2 sm:$0xff] %v296
      %s301 = scalar_lea.vmem [#allocation1], 16
      %302 = vst [vmem:[%s301] ss:$2 sm:$0xff] %v297
      %v303 = vld.sshfl [vmem:[#allocation1] sm:$0xff pattern:$0x75316420]
      %v304 = vld.sshfl [vmem:[#allocation1 + $0x8] sm:$0xff pattern:$0x75316420]
      %v305 = vld.sshfl [vmem:[#allocation1 + $0x10] sm:$0xff pattern:$0x75316420]
      %306 = vrot.lane.b32.xlu0 %v303, 112
      %v307 = vpop.permute.xlu0 %306
      %308 = vrot.lane.b32.xlu0 %v304, 112
      %v309 = vpop.permute.xlu0 %308
      %310 = vrot.lane.b32.xlu0 %v305, 112
      %v311 = vpop.permute.xlu0 %310
      %vm312 = vcmask 916480
      %v313 = vsel %vm312, %v307, %v309
      %v314 = vsel %vm312, %v309, %v311
      %v317 = vsel %vm220, %v313, 0.0
      %v318 = vsel %vm221, %v314, 0.0
      %v321 = vrot.slane %v317, 7
      %v322 = vrot.slane %v318, 7
      %325 = vst [vmem:[#allocation2 + $0x10] sm:$0xe] %v321
      %326 = vst [vmem:[#allocation2 + $0x18] sm:$0xe] %v322
      %v327 = vld [vmem:[%s197] sm:$0x77]
      %v328 = vld [vmem:[%s197 + $0x8] sm:$0x7]
      %s331 = scalar_lea.vmem [#allocation1], 1
      %332 = vst [vmem:[%s331] ss:$2 sm:$0xff] %v327
      %s333 = scalar_lea.vmem [#allocation1], 17
      %334 = vst [vmem:[%s333] ss:$2 sm:$0xff] %v328
      %v335 = vld.sshfl [vmem:[#allocation1] sm:$0xff pattern:$0x75316420]
      %v336 = vld.sshfl [vmem:[#allocation1 + $0x8] sm:$0xff pattern:$0x75316420]
      %v337 = vld.sshfl [vmem:[#allocation1 + $0x10] sm:$0xff pattern:$0x75316420]
      %338 = vrot.lane.b32.xlu0 %v335, 111
      %v339 = vpop.permute.xlu0 %338
      %340 = vrot.lane.b32.xlu0 %v336, 111
      %v341 = vpop.permute.xlu0 %340
      %342 = vrot.lane.b32.xlu0 %v337, 111
      %v343 = vpop.permute.xlu0 %342
      %vm344 = vcmask 908288
      %v345 = vsel %vm344, %v339, %v341
      %v346 = vsel %vm344, %v341, %v343
      %349 = vst [vmem:[#allocation2 + $0x10] sm:$0x70] %v345
      %350 = vst [vmem:[#allocation2 + $0x18] sm:$0x70] %v346
      %v351 = vld [vmem:[%s197] sm:$0x77]
      %v352 = vld [vmem:[%s197 + $0x8] sm:$0x7]
      %355 = vst [vmem:[#allocation1] ss:$2 sm:$0xff] %v351
      %s356 = scalar_lea.vmem [#allocation1], 16
      %357 = vst [vmem:[%s356] ss:$2 sm:$0xff] %v352
      %v358 = vld.sshfl [vmem:[#allocation1] sm:$0xff pattern:$0x75316420]
      %v359 = vld.sshfl [vmem:[#allocation1 + $0x8] sm:$0xff pattern:$0x75316420]
      %v360 = vld.sshfl [vmem:[#allocation1 + $0x10] sm:$0xff pattern:$0x75316420]
      %361 = vrot.lane.b32.xlu0 %v358, 110
      %v362 = vpop.permute.xlu0 %361
      %363 = vrot.lane.b32.xlu0 %v359, 110
      %v364 = vpop.permute.xlu0 %363
      %365 = vrot.lane.b32.xlu0 %v360, 110
      %v366 = vpop.permute.xlu0 %365
      %vm367 = vcmask 900096
      %v368 = vsel %vm367, %v362, %v364
      %v369 = vsel %vm367, %v364, %v366
      %v372 = vsel %vm263, %v368, 0.0
      %v373 = vsel %vm264, %v369, 0.0
      %v376 = vrot.slane %v372, 1
      %v377 = vrot.slane %v373, 1
      %380 = vst [vmem:[#allocation2 + $0x10] sm:$0x80] %v376
      %381 = vst [vmem:[#allocation2 + $0x18] sm:$0x80] %v377
      %382 = vst [vmem:[#allocation2 + $0x20] sm:$0x3] %v376
      %383 = vst [vmem:[#allocation2 + $0x28] sm:$0x3] %v377
      %v384 = vld [vmem:[%s197] sm:$0x77]
      %v385 = vld [vmem:[%s197 + $0x8] sm:$0x7]
      %388 = vst [vmem:[#allocation1] ss:$2 sm:$0xff] %v384
      %s389 = scalar_lea.vmem [#allocation1], 16
      %390 = vst [vmem:[%s389] ss:$2 sm:$0xff] %v385
      %v391 = vld.sshfl [vmem:[#allocation1] sm:$0xff pattern:$0x75316420]
      %v392 = vld.sshfl [vmem:[#allocation1 + $0x8] sm:$0xff pattern:$0x75316420]
      %v393 = vld.sshfl [vmem:[#allocation1 + $0x10] sm:$0xff pattern:$0x75316420]
      %394 = vrot.lane.b32.xlu0 %v391, 96
      %v395 = vpop.permute.xlu0 %394
      %396 = vrot.lane.b32.xlu0 %v392, 96
      %v397 = vpop.permute.xlu0 %396
      %398 = vrot.lane.b32.xlu0 %v393, 96
      %v399 = vpop.permute.xlu0 %398
      %vm400 = vcmask 785408
      %v401 = vsel %vm400, %v395, %v397
      %v402 = vsel %vm400, %v397, %v399
      %v405 = vsel %vm220, %v401, 0.0
      %v406 = vsel %vm221, %v402, 0.0
      %v409 = vrot.slane %v405, 6
      %v410 = vrot.slane %v406, 6
      %413 = vst [vmem:[#allocation2 + $0x20] sm:$0x1c] %v409
      %414 = vst [vmem:[#allocation2 + $0x28] sm:$0x1c] %v410
      %v415 = vld [vmem:[%s197] sm:$0x77]
      %v416 = vld [vmem:[%s197 + $0x8] sm:$0x7]
      %419 = vst [vmem:[#allocation1] ss:$2 sm:$0xff] %v415
      %s420 = scalar_lea.vmem [#allocation1], 16
      %421 = vst [vmem:[%s420] ss:$2 sm:$0xff] %v416
      %v422 = vld.sshfl [vmem:[#allocation1] sm:$0xff pattern:$0x75316420]
      %v423 = vld.sshfl [vmem:[#allocation1 + $0x8] sm:$0xff pattern:$0x75316420]
      %v424 = vld.sshfl [vmem:[#allocation1 + $0x10] sm:$0xff pattern:$0x75316420]
      %v425 = vrot.slane %v422, 3
      %v426 = vrot.slane %v423, 3
      %v427 = vrot.slane %v424, 3
      %428 = vrot.lane.b32.xlu0 %v425, 95
      %v429 = vpop.permute.xlu0 %428
      %430 = vrot.lane.b32.xlu0 %v426, 95
      %v431 = vpop.permute.xlu0 %430
      %432 = vrot.lane.b32.xlu0 %v427, 95
      %v433 = vpop.permute.xlu0 %432
      %vm434 = vcmask 777216
      %v435 = vsel %vm434, %v429, %v431
      %v436 = vsel %vm434, %v431, %v433
      %439 = vst [vmem:[#allocation2 + $0x20] sm:$0xe0] %v435
      %440 = vst [vmem:[#allocation2 + $0x28] sm:$0xe0] %v436
      %v441 = vld [vmem:[%s197] sm:$0x77]
      %v442 = vld [vmem:[%s197 + $0x8] sm:$0x7]
      %445 = vst [vmem:[#allocation1] ss:$2 sm:$0xff] %v441
      %s446 = scalar_lea.vmem [#allocation1], 16
      %447 = vst [vmem:[%s446] ss:$2 sm:$0xff] %v442
      %v448 = vld.sshfl [vmem:[#allocation1] sm:$0xff pattern:$0x75316420]
      %v449 = vld.sshfl [vmem:[#allocation1 + $0x8] sm:$0xff pattern:$0x75316420]
      %v450 = vld.sshfl [vmem:[#allocation1 + $0x10] sm:$0xff pattern:$0x75316420]
      %451 = vrot.lane.b32.xlu0 %v448, 94
      %v452 = vpop.permute.xlu0 %451
      %453 = vrot.lane.b32.xlu0 %v449, 94
      %v454 = vpop.permute.xlu0 %453
      %455 = vrot.lane.b32.xlu0 %v450, 94
      %v456 = vpop.permute.xlu0 %455
      %vm457 = vcmask 769024
      %v458 = vsel %vm457, %v452, %v454
      %v459 = vsel %vm457, %v454, %v456
      %v462 = vsel %vm263, %v458, 0.0
      %v463 = vsel %vm264, %v459, 0.0
      %464 = vst [vmem:[#allocation2 + $0x30] sm:$0x7] %v462
      %465 = vst [vmem:[#allocation2 + $0x38] sm:$0x7] %v463
      %v466 = vld [vmem:[%s1] sm:$0xff]
      %v467 = vld [vmem:[%s1 + $0x8] sm:$0xff]
      %v468 = vld [vmem:[%s1 + $0x10] sm:$0xff]
      %v469 = vld [vmem:[%s1 + $0x18] sm:$0xff]
      %v470 = vld [vmem:[%s1 + $0x20] sm:$0xff]
      %v471 = vld [vmem:[%s1 + $0x28] sm:$0xff]
      %v472 = vld [vmem:[#allocation2] sm:$0xff]
      %v473 = vld [vmem:[#allocation2 + $0x8] sm:$0xff]
      %v474 = vld [vmem:[#allocation2 + $0x10] sm:$0xff]
      %v475 = vld [vmem:[#allocation2 + $0x18] sm:$0xff]
      %v476 = vld [vmem:[#allocation2 + $0x20] sm:$0xff]
      %v477 = vld [vmem:[#allocation2 + $0x28] sm:$0xff]
      %v478 = vld [vmem:[#allocation2 + $0x30] sm:$0x7]
      %v479 = vld [vmem:[#allocation2 + $0x38] sm:$0x7]
      %vm480 = vcmask 220160
      %v482 = vsel %vm480, %v466, 0
      %v485 = vsel %vm480, %v467, 0
      %v488 = vsel %vm480, %v468, 0
      %v491 = vsel %vm480, %v469, 0
      %v494 = vsel %vm480, %v470, 0
      %v497 = vsel %vm480, %v471, 0
      %vm499 = vcmask 1042432
      %v501 = vsel %vm499, %v478, 0
      %v504 = vsel %vm499, %v479, 0
      %506 = vmatpush.msra.mxu0 0.0
      %507 = vmatpush.msra.mxu0 0.0
      %508 = vmatpush.msra.mxu0 0.0
      %509 = vmatpush.msra.mxu0 0.0
      %510 = vmatpush.msra.mxu0 0.0
      %511 = vmatpush.msra.mxu0 0.0
      %512 = vmatpush.msra.mxu0 0.0
      %513 = vmatpush.msra.mxu0 0.0
      %514 = vmatpush.msra.mxu0 0.0
      %515 = vmatpush.msra.mxu0 0.0
      %516 = vmatpush.msra.mxu0 0.0
      %517 = vmatpush.msra.mxu0 0.0
      %518 = vmatpush.msra.mxu0 %v501
      %519 = vmatpush.msra.mxu0 %v476
      %520 = vmatpush.msra.mxu0 %v474
      %521 = vmatpush.msra.mxu0 %v472
      %522 = vmatmul.f32.gmra.mxu0 %v482
      %v523 = vpop.f32.mrf.mxu0
      %v524 = vadd.f32 0.0, %v523
      %525 = vmatmul.f32.gmra.mxu0 %v485
      %v526 = vpop.f32.mrf.mxu0
      %v527 = vadd.f32 0.0, %v526
      %528 = vmatmul.f32.gmra.mxu0 %v488
      %v529 = vpop.f32.mrf.mxu0
      %v530 = vadd.f32 0.0, %v529
      %531 = vmatmul.f32.gmra.mxu0 %v491
      %v532 = vpop.f32.mrf.mxu0
      %v533 = vadd.f32 0.0, %v532
      %534 = vmatmul.f32.gmra.mxu0 %v494
      %v535 = vpop.f32.mrf.mxu0
      %v536 = vadd.f32 0.0, %v535
      %537 = vmatmul.f32.gmra.mxu0 %v497
      %v538 = vpop.f32.mrf.mxu0
      %v539 = vadd.f32 0.0, %v538
      %540 = vdwg.mxu0
      %541 = vmatpush.msra.mxu0 0.0
      %542 = vmatpush.msra.mxu0 0.0
      %543 = vmatpush.msra.mxu0 0.0
      %544 = vmatpush.msra.mxu0 0.0
      %545 = vmatpush.msra.mxu0 0.0
      %546 = vmatpush.msra.mxu0 0.0
      %547 = vmatpush.msra.mxu0 0.0
      %548 = vmatpush.msra.mxu0 0.0
      %549 = vmatpush.msra.mxu0 0.0
      %550 = vmatpush.msra.mxu0 0.0
      %551 = vmatpush.msra.mxu0 0.0
      %552 = vmatpush.msra.mxu0 0.0
      %553 = vmatpush.msra.mxu0 %v504
      %554 = vmatpush.msra.mxu0 %v477
      %555 = vmatpush.msra.mxu0 %v475
      %556 = vmatpush.msra.mxu0 %v473
      %557 = vmatmul.f32.gmra.mxu0 %v482
      %v558 = vpop.f32.mrf.mxu0
      %v559 = vadd.f32 0.0, %v558
      %560 = vmatmul.f32.gmra.mxu0 %v485
      %v561 = vpop.f32.mrf.mxu0
      %v562 = vadd.f32 0.0, %v561
      %563 = vmatmul.f32.gmra.mxu0 %v488
      %v564 = vpop.f32.mrf.mxu0
      %v565 = vadd.f32 0.0, %v564
      %566 = vmatmul.f32.gmra.mxu0 %v491
      %v567 = vpop.f32.mrf.mxu0
      %v568 = vadd.f32 0.0, %v567
      %569 = vmatmul.f32.gmra.mxu0 %v494
      %v570 = vpop.f32.mrf.mxu0
      %v571 = vadd.f32 0.0, %v570
      %572 = vmatmul.f32.gmra.mxu0 %v497
      %v573 = vpop.f32.mrf.mxu0
      %v574 = vadd.f32 0.0, %v573
      %575 = vdwg.mxu0
      %576 = vst [vmem:[%s211] sm:$0xff] %v524
      %577 = vst [vmem:[%s211 + $0x8] sm:$0xff] %v559
      %578 = vst [vmem:[%s211 + $0x10] sm:$0xff] %v527
      %579 = vst [vmem:[%s211 + $0x18] sm:$0xff] %v562
      %580 = vst [vmem:[%s211 + $0x20] sm:$0xff] %v530
      %581 = vst [vmem:[%s211 + $0x28] sm:$0xff] %v565
      %582 = vst [vmem:[%s211 + $0x30] sm:$0xff] %v533
      %583 = vst [vmem:[%s211 + $0x38] sm:$0xff] %v568
      %584 = vst [vmem:[%s211 + $0x40] sm:$0xff] %v536
      %585 = vst [vmem:[%s211 + $0x48] sm:$0xff] %v571
      %586 = vst [vmem:[%s211 + $0x50] sm:$0xff] %v539
      %587 = vst [vmem:[%s211 + $0x58] sm:$0xff] %v574
      %s588 = smul.u32 2, %s19
      %p589 = scmp.lt.s32.totalorder %s18, 1
      %s590 = scalar_select %p589, %s18, 1
      %p591 = scmp.lt.s32.totalorder %s588, 1
      %s592 = scalar_select %p591, %s588, 1
      %s593 = smul.addr %s590, 12
      %s594 = sadd.s32 %s592, %s593
      %s595 = smul.addr %s594, 8
      %s596 = scalar_lea.vmem %s3, %s595
      // Predicated region
      $region33: #{overlap_patch_embed.1} parent=31 // pred_check
        %p597 = pneg %p119
      $region34: #{overlap_patch_embed.1} parent=31 // pred_check_branch
        %599 = sbr.rel (%p597) target = $region36
      $region35: #{overlap_patch_embed.1} parent=31 // pred_region
        %s600 = smul.u32 2, %s19
      $region36: #{overlap_patch_embed.1} parent=31 // pred_fallthru
        _
    $region32: #{overlap_patch_embed.1} parent=5 // pred_fallthru
      _
    %p601 = scmp.le.s32.totalorder 2, %s9
    // Predicated region
    $region37: #{overlap_patch_embed.1} parent=5 // pred_check
      %p602 = pneg %p601
    $region38: #{overlap_patch_embed.1} parent=5 // pred_check_branch
      %604 = sbr.rel (%p602) target = $region40
    $region39: #{overlap_patch_embed.1} parent=5 // pred_region
      %s605 = ssub.s32 %s9, 2
      // Predicated region
      $region41: #{overlap_patch_embed.1} parent=39 // pred_check
        %p606 = pneg %p125
      $region42: #{overlap_patch_embed.1} parent=39 // pred_check_branch
        %608 = sbr.rel (%p606) target = $region44
      $region43: #{overlap_patch_embed.1} parent=39 // pred_region
        %s609 = smul.u32 2, %s21
        %p610 = scmp.lt.s32.totalorder %s20, 1
        %s611 = scalar_select %p610, %s20, 1
        %p612 = scmp.lt.s32.totalorder %s609, 1
        %s613 = scalar_select %p612, %s609, 1
        %s614 = smul.addr %s611, 12
        %s615 = sadd.s32 %s613, %s614
        %s616 = smul.addr %s615, 8
        %s617 = scalar_lea.vmem %s3, %s616
      $region44: #{overlap_patch_embed.1} parent=39 // pred_fallthru
        _
    $region40: #{overlap_patch_embed.1} parent=5 // pred_fallthru
      _
  $region6: #{overlap_patch_embed.1} parent=0 // loop_footer
    %s13 = sadd.s32 1, %s9
  $region7: #{overlap_patch_embed.1} parent=0 // loop_footer_branch
    %8 = sbr.rel target = $region3
  $region8: #{overlap_patch_embed.1} parent=0 // loop_exit
    _

</llo_original>
